<compile_context>
chip_gen: v7x
topology: tpu7x:2x2x1
jax: 0.10.0
libtpu: 0.0.40
codegen_flags: <defaults>
</compile_context>

<pallas_src>
import jax
import jax.numpy as jnp
from jax.experimental import pallas as pl
from jax.experimental.pallas import tpu as pltpu  # noqa: F401  (TPU backend assumed)

# ----------------------------- configuration -------------------------------
C_IN = 3            # input channels
C = 8               # starting model channels
N_CLASSES = 10
N_LAYERS = 6
STEM_MULT = 4       # stem_multiplier
N_BIG_NODES = N_LAYERS // 3          # = 2
N_OPS = 8           # stand-in for len(gt.PRIMITIVES2) (gt not provided)
H = W = 16
B = 2
BN_EPS = 1e-5

K_TAPS = 9 * C_IN                    # 27 im2col taps (3x3 x Cin)
K_PAD = 32                           # taps padded to a sublane-friendly size
D_FEAT = 32 * C                      # 256 = head input width (32*C)
N_CLS_PAD = 128                      # lane-dense head / logits width

# alpha row counts: 3 groups x [node 0: 2 rows, later nodes: 3 rows]
ALPHA_ROWS = tuple((i + 2 if i < 1 else 3)
                   for _ in range(3) for i in range(N_BIG_NODES))
ALPHA_TOTAL_ROWS = sum(ALPHA_ROWS)   # 15
ALPHA_STACK_ROWS = 16                # padded to a multiple of 8 sublanes


# ------------------------------ Pallas kernel -------------------------------
def _controller_forward_kernel(alpha_ref, p_ref, w_ref, b_ref,
                               logits_ref, soft_ref):
    # alpha_ref : (16, N_OPS)        f32  all 6 alpha tensors stacked (+1 pad row)
    # p_ref     : (B, K_PAD, H*W)    f32  im2col patches, taps on sublanes
    # w_ref     : (K_PAD, 128)       bf16 conv3x3 (x) BN (x) bridge (x) head fused
    # b_ref     : (1, 128)           f32  fused bias (lane-padded)
    # logits_ref: (B, 128)           f32  lane-dense logits (first N_CLASSES valid)
    # soft_ref  : (16, N_OPS)        f32  row-softmax of the alpha stack

    # --- controller: weights_DAG = [softmax(alpha, dim=-1) for alpha in alpha_DAG]
    a = alpha_ref[...]
    m = jnp.max(a, axis=-1, keepdims=True)
    e = jnp.exp(a - m)
    soft_ref[...] = e / jnp.sum(e, axis=-1, keepdims=True)

    # --- net: GAP commuted ahead of the (linear placeholder) stem/bridge/head.
    # TODO(synk): the real (nonlinear) cells / SearchBigDAGs consuming the
    # softmaxed weights would sit between the stem and GAP, invalidating this
    # fold; it is exact only while the placeholder bridge stays linear.
    gap = jnp.mean(p_ref[...], axis=-1)                       # (B, K_PAD), XLU reduce
    logits_ref[...] = (
        jnp.dot(gap.astype(jnp.bfloat16), w_ref[...],
                preferred_element_type=jnp.float32)           # (B, 128) MXU, f32 acc
        + b_ref[...])


def controller_forward_call(alpha_stack, patches_t, w_all, b_all):
    """Single-step pallas_call (no grid): every operand is one full VMEM block."""
    b = patches_t.shape[0]
    return pl.pallas_call(
        _controller_forward_kernel,
        out_shape=(
            jax.ShapeDtypeStruct((b, N_CLS_PAD), jnp.float32),            # logits (padded)
            jax.ShapeDtypeStruct((ALPHA_STACK_ROWS, N_OPS), jnp.float32),  # softmax stack
        ),
    )(alpha_stack, patches_t, w_all, b_all)


# ------------------------- parameters (deterministic) -----------------------
def init_params(key):
    ks = jax.random.split(key, 8)
    c_cur = STEM_MULT * C

    # alpha_DAG: 3 groups of n_big_nodes; node 0 -> (2, n_ops), else (3, n_ops)
    alphas = []
    ak = jax.random.split(ks[0], 3 * N_BIG_NODES)
    for idx, rows in enumerate(ALPHA_ROWS):
        alphas.append(0.001 * jax.random.normal(ak[idx], (rows, N_OPS),
                                                jnp.float32))

    return {
        "alphas": alphas,
        # PyTorch conv weight layout (Cout, Cin, kh, kw)
        "stem_w": 0.5 * jax.random.normal(ks[1], (c_cur, C_IN, 3, 3), jnp.float32),
        "bn_gamma": 1.0 + 0.1 * jax.random.normal(ks[2], (c_cur,), jnp.float32),
        "bn_beta": 0.1 * jax.random.normal(ks[3], (c_cur,), jnp.float32),
        "bn_mean": 0.1 * jax.random.normal(ks[4], (c_cur,), jnp.float32),
        "bn_var": 0.5 + jax.random.uniform(ks[5], (c_cur,), jnp.float32),
        # placeholder bridge (see TODO above): 4*C -> 32*C
        "bridge_w": 0.2 * jax.random.normal(ks[6], (c_cur, D_FEAT), jnp.float32),
        # PyTorch linear layout (n_classes, 32*C)
        "lin_w": 0.2 * jax.random.normal(ks[7], (N_CLASSES, D_FEAT), jnp.float32),
        "lin_b": 0.1 * jnp.arange(N_CLASSES, dtype=jnp.float32),
    }


def prepare_params(params):
    """One-time weight preprocessing (hoisted out of forward)."""
    hp = jax.lax.Precision.HIGHEST
    c_cur = STEM_MULT * C

    # Stack all alphas so the controller softmax rides inside the single kernel.
    pad = jnp.zeros((ALPHA_STACK_ROWS - ALPHA_TOTAL_ROWS, N_OPS), jnp.float32)
    alpha_stack = jnp.concatenate(list(params["alphas"]) + [pad], axis=0)

    # Conv weight (Cout, Cin, kh, kw) -> (kh*kw*Cin, Cout); tap k = (kh*3+kw)*Cin+cin.
    w9 = jnp.transpose(params["stem_w"], (2, 3, 1, 0)).reshape(K_TAPS, c_cur)
    # Inference BatchNorm fold.
    scale = params["bn_gamma"] / jnp.sqrt(params["bn_var"] + BN_EPS)
    bias = params["bn_beta"] - params["bn_mean"] * scale

    # Fold conv3x3 (x) BN (x) linear bridge (x) GAP-commute (x) head — exact while
    # the bridge stays linear (see TODO at top).  All folds in f32 HIGHEST.
    w_fused = jnp.dot(w9 * scale[None, :], params["bridge_w"], precision=hp)  # (27, 256)
    b_fused = jnp.dot(bias, params["bridge_w"], precision=hp)                 # (256,)

    # Lane-dense head: pad n_classes 10 -> 128 so stores/loads are unmasked.
    w_head = jnp.zeros((D_FEAT, N_CLS_PAD), jnp.float32)
    w_head = w_head.at[:, :N_CLASSES].set(params["lin_w"].T)
    b_head = jnp.zeros((N_CLS_PAD,), jnp.float32).at[:N_CLASSES].set(params["lin_b"])

    w_all = jnp.pad(jnp.dot(w_fused, w_head, precision=hp),
                    ((0, K_PAD - K_TAPS), (0, 0)))                            # (32, 128)
    b_all = (jnp.dot(b_fused, w_head, precision=hp) + b_head).reshape(1, N_CLS_PAD)

    return {
        "alpha_stack": alpha_stack,
        "w_all": w_all.astype(jnp.bfloat16),   # bf16 MXU operand, f32 accumulate
        "b_all": b_all.astype(jnp.float32),
    }


# --------------------------------- forward ----------------------------------
def _im2col_t(x_nchw):
    """(B, Cin, H, W) -> (B, K_PAD, H*W) f32 patches; tap order (kh, kw, cin)."""
    xp = jnp.pad(x_nchw, ((0, 0), (0, 0), (1, 1), (1, 1)))
    cols = [xp[:, :, dy:dy + H, dx:dx + W] for dy in range(3) for dx in range(3)]
    p = jnp.concatenate(cols, axis=1).reshape(x_nchw.shape[0], K_TAPS, H * W)
    return jnp.pad(p, ((0, 0), (0, K_PAD - K_TAPS), (0, 0)))


@jax.jit
def forward(prep, x_nchw):
    # im2col of the zero-padded input (layout glue, fused by XLA).
    patches_t = _im2col_t(x_nchw)

    # ONE Pallas launch: controller softmax + stem/bridge/GAP/head.
    logits_pad, soft = controller_forward_call(
        prep["alpha_stack"], patches_t, prep["w_all"], prep["b_all"])

    # Per-alpha views of the stacked softmax (static slices).
    weights_DAG, off = [], 0
    for rows in ALPHA_ROWS:
        weights_DAG.append(soft[off:off + rows])
        off += rows

    return logits_pad[:, :N_CLASSES], weights_DAG


# --------------------------- pure-JAX f32 reference -------------------------
def reference_forward(params, x_nchw):
    """Unfused f32 reference (conv+BN per position -> bridge -> GAP -> head)."""
    hp = jax.lax.Precision.HIGHEST
    c_cur = STEM_MULT * C
    p = _im2col_t(x_nchw)[:, :K_TAPS, :]                                  # (B, 27, HW)
    w9 = jnp.transpose(params["stem_w"], (2, 3, 1, 0)).reshape(K_TAPS, c_cur)
    scale = params["bn_gamma"] / jnp.sqrt(params["bn_var"] + BN_EPS)
    bias = params["bn_beta"] - params["bn_mean"] * scale
    feat = jnp.einsum("bkp,ko->bpo", p, w9, precision=hp) * scale + bias  # stem + BN
    feat = jnp.einsum("bpo,od->bpd", feat, params["bridge_w"], precision=hp)
    gap = jnp.mean(feat, axis=1)                                          # GAP
    logits = jnp.dot(gap, params["lin_w"].T, precision=hp) + params["lin_b"]
    weights = [jax.nn.softmax(a, axis=-1) for a in params["alphas"]]
    return logits, weights


# ----------------------------------- main ------------------------------------
if __name__ == "__main__":
    key = jax.random.PRNGKey(0)
    pkey, xkey = jax.random.split(key)
    params = init_params(pkey)
    prep = prepare_params(params)
    x = jax.random.normal(xkey, (B, C_IN, H, W), jnp.float32)   # NCHW like PyTorch

    logits, weights_DAG = forward(prep, x)
    jax.block_until_ready(logits)
    for wd in weights_DAG:
        jax.block_until_ready(wd)

    # Shapes match the PyTorch controller.
    assert logits.shape == (B, N_CLASSES)
    assert len(weights_DAG) == 3 * N_BIG_NODES
    assert tuple(wd.shape[0] for wd in weights_DAG) == ALPHA_ROWS

    # Controller check: stacked-softmax slices == per-alpha softmax, rows sum to 1.
    for wd, alpha in zip(weights_DAG, params["alphas"]):
        assert jnp.allclose(jnp.sum(wd, axis=-1), 1.0, atol=1e-5)
        assert jnp.allclose(wd, jax.nn.softmax(alpha, axis=-1), atol=1e-5)

    # Net check vs unfused pure-JAX f32 reference (bf16-operand tolerance).
    ref_logits, _ = reference_forward(params, x)
    assert jnp.allclose(logits, ref_logits, rtol=5e-2, atol=2e-2)

    print("KERNEL_OK")
</pallas_src>

<mosaic_0001>
module attributes {stable_mosaic.version = 11 : i64} {
  func.func @_controller_forward_kernel(%arg0: memref<16x8xf32, #tpu.memory_space<vmem>>, %arg1: memref<2x32x256xf32, #tpu.memory_space<vmem>>, %arg2: memref<32x128xbf16, #tpu.memory_space<vmem>>, %arg3: memref<1x128xf32, #tpu.memory_space<vmem>>, %arg4: memref<2x128xf32, #tpu.memory_space<vmem>>, %arg5: memref<16x8xf32, #tpu.memory_space<vmem>>) attributes {dimension_semantics = [], scalar_prefetch = 0 : i64, scratch_operands = 0 : i64, tpu.core_type = #tpu.core_type<tc>} {
    %c0 = arith.constant 0 : index
    %c0_0 = arith.constant 0 : index
    %0 = vector.load %arg0[%c0, %c0_0] : memref<16x8xf32, #tpu.memory_space<vmem>>, vector<16x8xf32>
    %cst = arith.constant dense<0xFF800000> : vector<16xf32>
    %1 = vector.multi_reduction <maximumf>, %0, %cst [1] : vector<16x8xf32> to vector<16xf32>
    %2 = vector.shape_cast %1 : vector<16xf32> to vector<16x1xf32>
    %3 = vector.broadcast %2 : vector<16x1xf32> to vector<16x8xf32>
    %4 = arith.subf %0, %3 : vector<16x8xf32>
    %5 = math.exp %4 : vector<16x8xf32>
    %cst_1 = arith.constant dense<0.000000e+00> : vector<16xf32>
    %6 = vector.multi_reduction <add>, %5, %cst_1 [1] : vector<16x8xf32> to vector<16xf32>
    %7 = vector.shape_cast %6 : vector<16xf32> to vector<16x1xf32>
    %8 = vector.broadcast %7 : vector<16x1xf32> to vector<16x8xf32>
    %9 = arith.divf %5, %8 : vector<16x8xf32>
    %c0_2 = arith.constant 0 : index
    %c0_3 = arith.constant 0 : index
    %10 = vector.load %arg5[%c0_2, %c0_3] : memref<16x8xf32, #tpu.memory_space<vmem>>, vector<16x8xf32>
    tpu.vector_store %arg5[%c0_2, %c0_3], %9 {strides = array<i32>} : memref<16x8xf32, #tpu.memory_space<vmem>>, vector<16x8xf32>,
    %c0_4 = arith.constant 0 : index
    %c0_5 = arith.constant 0 : index
    %c0_6 = arith.constant 0 : index
    %11 = vector.load %arg1[%c0_4, %c0_5, %c0_6] : memref<2x32x256xf32, #tpu.memory_space<vmem>>, vector<2x32x256xf32>
    %cst_7 = arith.constant dense<0.000000e+00> : vector<2x32xf32>
    %12 = vector.multi_reduction <add>, %11, %cst_7 [2] : vector<2x32x256xf32> to vector<2x32xf32>
    %cst_8 = arith.constant 2.560000e+02 : f32
    %13 = vector.broadcast %cst_8 : f32 to vector<2x32xf32>
    %14 = arith.divf %12, %13 : vector<2x32xf32>
    %15 = arith.truncf %14 : vector<2x32xf32> to vector<2x32xbf16>
    %c0_9 = arith.constant 0 : index
    %c0_10 = arith.constant 0 : index
    %16 = vector.load %arg2[%c0_9, %c0_10] : memref<32x128xbf16, #tpu.memory_space<vmem>>, vector<32x128xbf16>
    %cst_11 = arith.constant dense<0.000000e+00> : vector<2x128xf32>
    %17 = tpu.matmul %15, %16, %cst_11 {dimension_numbers = #tpu.dot_dimension_numbers<[1], [0], [0], [1], [0, 0, 1, 1], [], []>} : vector<2x32xbf16>, vector<32x128xbf16>, vector<2x128xf32> -> vector<2x128xf32>
    %c0_12 = arith.constant 0 : index
    %c0_13 = arith.constant 0 : index
    %18 = vector.load %arg3[%c0_12, %c0_13] : memref<1x128xf32, #tpu.memory_space<vmem>>, vector<1x128xf32>
    %19 = vector.broadcast %18 : vector<1x128xf32> to vector<2x128xf32>
    %20 = arith.addf %17, %19 : vector<2x128xf32>
    %c0_14 = arith.constant 0 : index
    %c0_15 = arith.constant 0 : index
    %21 = vector.load %arg4[%c0_14, %c0_15] : memref<2x128xf32, #tpu.memory_space<vmem>>, vector<2x128xf32>
    tpu.vector_store %arg4[%c0_14, %c0_15], %20 {strides = array<i32>} : memref<2x128xf32, #tpu.memory_space<vmem>>, vector<2x128xf32>,
    return
  }
}

</mosaic_0001>

<llo_original>
// kernel: forward.1
$region0: #{forward.1}
  #allocation0 [shape = 'u32[]', space=smem, size = 0x4, offset = 0x4, fixed_abs, tag = 'smem constant byte address 0x4 - core index']
  #allocation1 [shape = 'u32[144,128]{1,0:T(1,128)}', space=vmem, size = 0x12000, scoped, tag = 'internal scratch']
  %s0 = inlined_call_operand.vmem [shape: f32[16,8], index: 0, kind: input, shape index: {}]
  %s1 = inlined_call_operand.vmem [shape: f32[2,32,256], index: 1, kind: input, shape index: {}]
  %s2 = inlined_call_operand.vmem [shape: bf16[32,128], index: 2, kind: input, shape index: {}]
  %s3 = inlined_call_operand.vmem [shape: f32[1,128], index: 3, kind: input, shape index: {}]
  %s4 = inlined_call_operand.hbm [shape: f32[2,128], index: 4, kind: output, shape index: {0}]
  %s5 = inlined_call_operand.vmem [shape: f32[16,8], index: 5, kind: output, shape index: {1}]
  %6 = xla_tuple %s4, %s5
  %s7 = sld [smem:[#allocation0]]
  $region34: #{forward.1} parent=0
    _
  %s9 = ssub.s32 1, %s7
  %s10 = scalar_select 0, %s9, %s7
  $region1: #{forward.1} parent=0
    #allocation2 [shape = 'u8[1024]{0}', space=vmem, size = 0x400, scoped, tag = 'output window, operand 0, single buffered']
    #allocation3 [shape = 's32[1]{0}', space=sflag, size = 0x4, scoped, tag = 'scoped memory for forward.1']
    %11 = vsyncpa [#allocation3], 0
    // Predicated region
    $region2: #{forward.1} parent=1 // pred_check
      _
    $region3: #{forward.1} parent=1 // pred_check_branch
      %13 = sbr.rel (0) target = $region5
    $region4: #{forward.1} parent=1 // pred_region
      _
    $region5: #{forward.1} parent=1 // pred_fallthru
      _
    // Predicated region
    $region6: #{forward.1} parent=1 // pred_check
      _
    $region7: #{forward.1} parent=1 // pred_check_branch
      %15 = sbr.rel (0) target = $region9
    $region8: #{forward.1} parent=1 // pred_region
      _
    $region9: #{forward.1} parent=1 // pred_fallthru
      _
    // Predicated region
    $region10: #{forward.1} parent=1 // pred_check
      _
    $region11: #{forward.1} parent=1 // pred_check_branch
      %17 = sbr.rel (0) target = $region13
    $region12: #{forward.1} parent=1 // pred_region
      _
    $region13: #{forward.1} parent=1 // pred_fallthru
      _
    // Predicated region
    $region14: #{forward.1} parent=1 // pred_check
      _
    $region15: #{forward.1} parent=1 // pred_check_branch
      %19 = sbr.rel (0) target = $region17
    $region16: #{forward.1} parent=1 // pred_region
      _
    $region17: #{forward.1} parent=1 // pred_fallthru
      _
    %v21 = vld [vmem:[%s0] sm:$0xff]
    %v22 = vld [vmem:[%s0 + $0x8] sm:$0xff]
    %vm23 = vcmask 64512
    %v24 = vsel %vm23, %v21, -inf
    %25 = vmax.xlane.f32.xlu0 %v24
    %v26 = vpop.xlane.xlu0 %25
    %v27 = vsel %vm23, %v22, -inf
    %28 = vmax.xlane.f32.xlu0 %v27
    %v29 = vpop.xlane.xlu0 %28
    %v30 = vsub.f32 %v21, %v26
    %v31 = vsub.f32 %v22, %v29
    %v32 = vmul.f32 %v30, 1.442695
    %v33 = vpow.pop %v32
    %v34 = vmul.f32 %v31, 1.442695
    %v35 = vpow.pop %v34
    %v36 = vsel %vm23, %v33, 0.0
    %37 = vadd.xlane.f32.xlu0 %v36
    %v38 = vpop.xlane.xlu0 %37
    %v39 = vsel %vm23, %v35, 0.0
    %40 = vadd.xlane.f32.xlu0 %v39
    %v41 = vpop.xlane.xlu0 %40
    %v42 = vrcp.pop %v38
    %v43 = vmul.f32 %v33, %v42
    %v44 = vrcp.pop %v41
    %v45 = vmul.f32 %v35, %v44
    %46 = vst.msk [vmem:[%s5] sm:$0xff] %vm23, %v43
    %47 = vst.msk [vmem:[%s5 + $0x8] sm:$0xff] %vm23, %v45
    %v48 = vld [vmem:[%s1] sm:$0xff]
    %v49 = vld [vmem:[%s1 + $0x8] sm:$0xff]
    %v50 = vld [vmem:[%s1 + $0x10] sm:$0xff]
    %v51 = vld [vmem:[%s1 + $0x18] sm:$0xff]
    %v52 = vld [vmem:[%s1 + $0x20] sm:$0xff]
    %v53 = vld [vmem:[%s1 + $0x28] sm:$0xff]
    %v54 = vld [vmem:[%s1 + $0x30] sm:$0xff]
    %v55 = vld [vmem:[%s1 + $0x38] sm:$0xff]
    %v56 = vld [vmem:[%s1 + $0x40] sm:$0xff]
    %v57 = vld [vmem:[%s1 + $0x48] sm:$0xff]
    %v58 = vld [vmem:[%s1 + $0x50] sm:$0xff]
    %v59 = vld [vmem:[%s1 + $0x58] sm:$0xff]
    %v60 = vld [vmem:[%s1 + $0x60] sm:$0xff]
    %v61 = vld [vmem:[%s1 + $0x68] sm:$0xff]
    %v62 = vld [vmem:[%s1 + $0x70] sm:$0xff]
    %v63 = vld [vmem:[%s1 + $0x78] sm:$0xff]
    %v64 = vadd.f32 %v48, %v49
    %65 = vadd.xlane.f32.xlu0 %v64
    %v66 = vpop.xlane.xlu0 %65
    %v67 = vadd.f32 %v50, %v51
    %68 = vadd.xlane.f32.xlu0 %v67
    %v69 = vpop.xlane.xlu0 %68
    %v70 = vadd.f32 %v52, %v53
    %71 = vadd.xlane.f32.xlu0 %v70
    %v72 = vpop.xlane.xlu0 %71
    %v73 = vadd.f32 %v54, %v55
    %74 = vadd.xlane.f32.xlu0 %v73
    %v75 = vpop.xlane.xlu0 %74
    %v76 = vadd.f32 %v56, %v57
    %77 = vadd.xlane.f32.xlu0 %v76
    %v78 = vpop.xlane.xlu0 %77
    %v79 = vadd.f32 %v58, %v59
    %80 = vadd.xlane.f32.xlu0 %v79
    %v81 = vpop.xlane.xlu0 %80
    %v82 = vadd.f32 %v60, %v61
    %83 = vadd.xlane.f32.xlu0 %v82
    %v84 = vpop.xlane.xlu0 %83
    %v85 = vadd.f32 %v62, %v63
    %86 = vadd.xlane.f32.xlu0 %v85
    %v87 = vpop.xlane.xlu0 %86
    %v88 = vrcp.pop 256.0
    %v89 = vmul.f32 %v66, %v88
    %v90 = vmul.f32 %v69, %v88
    %v91 = vmul.f32 %v72, %v88
    %v92 = vmul.f32 %v75, %v88
    %v93 = vmul.f32 %v78, %v88
    %v94 = vmul.f32 %v81, %v88
    %v95 = vmul.f32 %v84, %v88
    %v96 = vmul.f32 %v87, %v88
    %v97 = vpack.c.bf16 %v90, %v89
    %v98 = vpack.c.bf16 %v92, %v91
    %v99 = vpack.c.bf16 %v94, %v93
    %v100 = vpack.c.bf16 %v96, %v95
    %v101 = vld [vmem:[%s2] sm:$0xf]
    %v102 = vld [vmem:[%s2 + $0x4] sm:$0xf]
    %v103 = vld [vmem:[%s2 + $0x8] sm:$0xf]
    %v104 = vld [vmem:[%s2 + $0xc] sm:$0xf]
    %v105 = vld [vmem:[%s3] sm:$0x1]
    %v107 = vlaneseq
    %v108 = vshrl.u32 %v107, 7
    %v109 = vsub.s32 0, %v108
    %v110 = vrot.slane %v105, %v109
    %v116 = vunpack.c.l.b16 %v97
    %v117 = vunpack.c.h.b16 %v97
    %v118 = vunpack.c.l.b16 %v98
    %v119 = vunpack.c.h.b16 %v98
    %v120 = vunpack.c.l.b16 %v99
    %v121 = vunpack.c.h.b16 %v99
    %v122 = vunpack.c.l.b16 %v100
    %v123 = vunpack.c.h.b16 %v100
    %v124 = vlaneseq
    %v125 = vand.u32 %v124, 127
    %v126 = vlaneseq
    %v127 = vshrl.u32 %v126, 7
    %v128 = vsub.s32 %v125, %v127
    %v129 = vrot.slane %v116, %v128
    %v130 = vadd.s32 %v125, 4294967288
    %v131 = vlaneseq
    %v132 = vshrl.u32 %v131, 7
    %v133 = vsub.s32 %v130, %v132
    %v134 = vrot.slane %v117, %v133
    %vm135 = vcmask 130112
    %v136 = vsel %vm135, %v134, %v129
    %v137 = vadd.s32 %v125, 4294967280
    %v138 = vlaneseq
    %v139 = vshrl.u32 %v138, 7
    %v140 = vsub.s32 %v137, %v139
    %v141 = vrot.slane %v118, %v140
    %vm142 = vcmask 195712
    %v143 = vsel %vm142, %v141, %v136
    %v144 = vadd.s32 %v125, 4294967272
    %v145 = vlaneseq
    %v146 = vshrl.u32 %v145, 7
    %v147 = vsub.s32 %v144, %v146
    %v148 = vrot.slane %v119, %v147
    %vm149 = vcmask 261312
    %v150 = vsel %vm149, %v148, %v143
    %v151 = vlaneseq
    %v152 = vshrl.u32 %v151, 7
    %v153 = vsub.s32 %v125, %v152
    %v154 = vrot.slane %v120, %v153
    %v155 = vlaneseq
    %v156 = vshrl.u32 %v155, 7
    %v157 = vsub.s32 %v130, %v156
    %v158 = vrot.slane %v121, %v157
    %v159 = vsel %vm135, %v158, %v154
    %v160 = vlaneseq
    %v161 = vshrl.u32 %v160, 7
    %v162 = vsub.s32 %v137, %v161
    %v163 = vrot.slane %v122, %v162
    %v164 = vsel %vm142, %v163, %v159
    %v165 = vlaneseq
    %v166 = vshrl.u32 %v165, 7
    %v167 = vsub.s32 %v144, %v166
    %v168 = vrot.slane %v123, %v167
    %v169 = vsel %vm149, %v168, %v164
    %vm170 = vcmask 1041409
    %v171 = vsel %vm170, %v169, %v150
    %v172 = vpack.c.b16 %v171, %v171
    %v177 = vunpack.c.l.b16 %v101
    %v178 = vunpack.c.l.b16 %v102
    %v179 = vunpack.c.l.b16 %v103
    %v180 = vunpack.c.l.b16 %v104
    %v181 = vpack.c.b16 %v178, %v177
    %v182 = vpack.c.b16 %v180, %v179
    %vm185 = vcmask 261120
    %v187 = vsel %vm185, %v172, 0
    %189 = vmatprep.subr.bf16.mxu0 0
    %190 = vmatpush1.bf16.msra.mxu0 %v181
    %191 = vmatprep.subr.bf16.mxu0 0
    %192 = vmatpush1.bf16.msra.mxu0 %v182
    %193 = vmatprep.subr.bf16.mxu0 0
    %194 = vmatpush1.bf16.msra.mxu0 0
    %195 = vmatprep.subr.bf16.mxu0 0
    %196 = vmatpush1.bf16.msra.mxu0 0
    %197 = vmatprep.subr.bf16.mxu0 0
    %198 = vmatpush1.bf16.msra.mxu0 0
    %199 = vmatprep.subr.bf16.mxu0 0
    %200 = vmatpush1.bf16.msra.mxu0 0
    %201 = vmatprep.subr.bf16.mxu0 0
    %202 = vmatpush1.bf16.msra.mxu0 0
    %203 = vmatprep.subr.bf16.mxu0 0
    %204 = vmatpush1.bf16.msra.mxu0 0
    %205 = vmatprep.subr.bf16.mxu0 0
    %206 = vmatpush1.bf16.msra.mxu0 0
    %207 = vmatprep.subr.bf16.mxu0 0
    %208 = vmatpush1.bf16.msra.mxu0 0
    %209 = vmatprep.subr.bf16.mxu0 0
    %210 = vmatpush1.bf16.msra.mxu0 0
    %211 = vmatprep.subr.bf16.mxu0 0
    %212 = vmatpush1.bf16.msra.mxu0 0
    %213 = vmatprep.subr.bf16.mxu0 0
    %214 = vmatpush1.bf16.msra.mxu0 0
    %215 = vmatprep.subr.bf16.mxu0 0
    %216 = vmatpush1.bf16.msra.mxu0 0
    %217 = vmatprep.subr.bf16.mxu0 0
    %218 = vmatpush1.bf16.msra.mxu0 0
    %219 = vmatprep.subr.bf16.mxu0 0
    %220 = vmatpush1.bf16.msra.mxu0 0
    %221 = vmatprep.mubr.bf16.mxu0 0
    %222 = vmatmul.mubr.bf16.gmra.mrb[0].mxu0 %v187
    %v223 = vpop.f32.mrb[0].mxu0
    %v224 = vadd.f32 %v110, %v223
    %v225 = vpop.f32.mrb[0].mxu0
    %v226 = vpop.f32.mrb[0].mxu0
    %v227 = vpop.f32.mrb[0].mxu0
    %228 = vdwg.mxu0
    %229 = vst [vmem:[#allocation2] sm:$0x3] %v224
    // Predicated region
    $region18: #{forward.1} parent=1 // pred_check
      _
    $region19: #{forward.1} parent=1 // pred_check_branch
      %231 = sbr.rel (0) target = $region21
    $region20: #{forward.1} parent=1 // pred_region
      %s233 = ssub.s32 32, 32
      %234 = vsyncadd [#allocation3], %s233
      %s236 = sshll.u32 [#allocation2], 4
      %s237 = int_to_ptr.vmem [resolvable:$true] %s236
      %239 = dma.vmem_to_hbm [thread:$0]  %s237, 32, %s4, [#allocation3]
    $region21: #{forward.1} parent=1 // pred_fallthru
      _
    // Predicated region
    $region22: #{forward.1} parent=1 // pred_check
      _
    $region23: #{forward.1} parent=1 // pred_check_branch
      %241 = sbr.rel (0) target = $region25
    $region24: #{forward.1} parent=1 // pred_region
      _
    $region25: #{forward.1} parent=1 // pred_fallthru
      _
    // Predicated region
    $region26: #{forward.1} parent=1 // pred_check
      _
    $region27: #{forward.1} parent=1 // pred_check_branch
      %243 = sbr.rel (0) target = $region29
    $region28: #{forward.1} parent=1 // pred_region
      %244 = dma.done [#allocation3], 32
    $region29: #{forward.1} parent=1 // pred_fallthru
      _
    // Predicated region
    $region30: #{forward.1} parent=1 // pred_check
      _
    $region31: #{forward.1} parent=1 // pred_check_branch
      %246 = sbr.rel (0) target = $region33
    $region32: #{forward.1} parent=1 // pred_region
      _
    $region33: #{forward.1} parent=1 // pred_fallthru
      _
    %247 = vsyncpa [#allocation3], 1

</llo_original>
